<compile_context>
chip_gen: v7x
topology: tpu7x:2x2x1
jax: 0.10.0
libtpu: 0.0.40
codegen_flags: <defaults>
</compile_context>

<pallas_src>
import functools

import jax
import jax.numpy as jnp
from jax.experimental import pallas as pl
from jax.experimental.pallas import tpu as pltpu


def add_layernorm_kernel(x_ref, y_ref, g_ref, b_ref, o_ref, *, eps):
    # s = x + y in f32 (accuracy; also sidesteps v5e's lack of bf16 VPU/EUP).
    s = x_ref[...].astype(jnp.float32) + y_ref[...].astype(jnp.float32)
    inv_c = 1.0 / s.shape[-1]
    # Single pass over the lane axis: E[s] and E[s^2]; var = E[s^2] - E[s]^2,
    # clamped at 0 to avoid NaN from catastrophic cancellation.
    mean = jnp.sum(s, axis=-1, keepdims=True) * inv_c
    mean_sq = jnp.sum(s * s, axis=-1, keepdims=True) * inv_c
    var = jnp.maximum(mean_sq - mean * mean, 0.0)
    inv = jax.lax.rsqrt(var + eps)
    out = (s - mean) * inv * g_ref[...].astype(jnp.float32) + b_ref[...].astype(jnp.float32)
    o_ref[...] = out.astype(o_ref.dtype)


def _row_tile_cap():
    # v5e: 16 MiB default scoped VMEM -> cap 512 rows (double-buffered f32
    # tiles ~9.4 MiB). v6e/v7x: 32 MiB default -> 1024 rows (~18.9 MiB).
    try:
        kind = jax.devices()[0].device_kind.lower()
    except Exception:
        return 1024
    return 512 if "v5" in kind else 1024


def add_layernorm(x, y, gamma, beta, eps=1e-5):
    """x, y: (..., C) f32 or bf16; gamma, beta: (C,). LayerNorm over last axis."""
    orig_shape = x.shape
    C = orig_shape[-1]
    rows = 1
    for d in orig_shape[:-1]:
        rows *= d

    x2 = x.reshape(rows, C)
    y2 = y.reshape(rows, C)
    g2 = gamma.reshape(1, C).astype(jnp.float32)
    b2 = beta.reshape(1, C).astype(jnp.float32)

    # Row tile: multiple of 16 (bf16 (16,128) tile friendly), large enough to
    # amortize the ~0.35 us per-step overhead, capped per TPU generation so
    # the double-buffered (2 in + 1 out) tiles fit scoped VMEM.
    rows16 = ((rows + 15) // 16) * 16
    TR = min(_row_tile_cap(), rows16)
    grid = (pl.cdiv(rows, TR),)

    # Only raise the scoped-VMEM limit when the footprint actually needs it
    # (TR=1024 f32 ~ 18.9 MiB; v5e path never exceeds its 16 MiB default).
    itemsize = jnp.dtype(x.dtype).itemsize
    vmem_est = 3 * 2 * TR * C * itemsize  # 3 streams x 2 buffers
    vmem_limit = (28 << 20) if vmem_est > (14 << 20) else None

    kernel = functools.partial(add_layernorm_kernel, eps=eps)

    out = pl.pallas_call(
        kernel,
        out_shape=jax.ShapeDtypeStruct((rows, C), x.dtype),
        grid_spec=pl.GridSpec(
            grid=grid,
            in_specs=[
                pl.BlockSpec((TR, C), lambda i: (i, 0)),
                pl.BlockSpec((TR, C), lambda i: (i, 0)),
                pl.BlockSpec((1, C), lambda i: (0, 0)),  # gamma: resident
                pl.BlockSpec((1, C), lambda i: (0, 0)),  # beta: resident
            ],
            out_specs=pl.BlockSpec((TR, C), lambda i: (i, 0)),
        ),
        # Alias x2 -> output: same shape & dtype; avoids a separate HBM
        # output allocation / potential XLA copy.
        input_output_aliases={0: 0},
        compiler_params=pltpu.CompilerParams(
            dimension_semantics=("parallel",),
            vmem_limit_bytes=vmem_limit,
        ),
    )(x2, y2, g2, b2)
    return out.reshape(orig_shape)


def _reference(x, y, gamma, beta, eps=1e-5):
    s = x.astype(jnp.float32) + y.astype(jnp.float32)
    mean = jnp.mean(s, axis=-1, keepdims=True)
    var = jnp.mean((s - mean) ** 2, axis=-1, keepdims=True)
    return (s - mean) * jax.lax.rsqrt(var + eps) * gamma + beta


if __name__ == "__main__":
    key = jax.random.PRNGKey(0)
    k1, k2 = jax.random.split(key)

    # Shapes from the module's forward: (1, 7, 7, 768)
    x548 = jax.random.normal(k1, (1, 7, 7, 768), dtype=jnp.float32)
    x555 = jax.random.normal(k2, (1, 7, 7, 768), dtype=jnp.float32)

    # LayerNorm(768) params — PyTorch default init: weight=1, bias=0
    gamma = jnp.ones((768,), dtype=jnp.float32)
    beta = jnp.zeros((768,), dtype=jnp.float32)

    # f32 path (matches the PyTorch module exactly)
    out = add_layernorm(x548, x555, gamma, beta, eps=1e-5)
    jax.block_until_ready(out)
    ref = _reference(x548, x555, gamma, beta, eps=1e-5)
    assert out.shape == (1, 7, 7, 768)
    assert jnp.allclose(out, ref, atol=1e-4, rtol=1e-4), "f32 mismatch vs reference"

    # bf16 I/O path (half the HBM traffic; f32 accumulate inside the kernel)
    xb = x548.astype(jnp.bfloat16)
    yb = x555.astype(jnp.bfloat16)
    out_bf16 = add_layernorm(xb, yb, gamma, beta, eps=1e-5)
    jax.block_until_ready(out_bf16)
    ref_bf16 = _reference(xb, yb, gamma, beta, eps=1e-5)
    assert out_bf16.dtype == jnp.bfloat16
    assert jnp.allclose(out_bf16.astype(jnp.float32), ref_bf16, atol=5e-2, rtol=5e-2), \
        "bf16 mismatch vs reference"

    print("KERNEL_OK")
</pallas_src>

<mosaic_0001>
module attributes {stable_mosaic.version = 11 : i64} {
  func.func @add_layernorm_kernel(%arg0: i32, %arg1: memref<64x768xf32, #tpu.memory_space<vmem>>, %arg2: memref<64x768xf32, #tpu.memory_space<vmem>>, %arg3: memref<1x768xf32, #tpu.memory_space<vmem>>, %arg4: memref<1x768xf32, #tpu.memory_space<vmem>>, %arg5: memref<64x768xf32, #tpu.memory_space<vmem>>) attributes {dimension_semantics = [#tpu.dimension_semantics<parallel>], iteration_bounds = array<i64: 1>, scalar_prefetch = 0 : i64, scratch_operands = 0 : i64, tpu.core_type = #tpu.core_type<tc>, window_params = [{transform_indices = @transform_0, window_bounds = array<i64: 64, 768>}, {transform_indices = @transform_1, window_bounds = array<i64: 64, 768>}, {pipeline_mode = #tpu.pipeline_mode<synchronous>, transform_indices = @transform_2, window_bounds = array<i64: 1, 768>}, {pipeline_mode = #tpu.pipeline_mode<synchronous>, transform_indices = @transform_3, window_bounds = array<i64: 1, 768>}, {transform_indices = @transform_4, window_bounds = array<i64: 64, 768>}]} {
    %c0 = arith.constant 0 : index
    %c0_0 = arith.constant 0 : index
    %0 = vector.load %arg1[%c0, %c0_0] : memref<64x768xf32, #tpu.memory_space<vmem>>, vector<64x768xf32>
    %c0_1 = arith.constant 0 : index
    %c0_2 = arith.constant 0 : index
    %1 = vector.load %arg2[%c0_1, %c0_2] : memref<64x768xf32, #tpu.memory_space<vmem>>, vector<64x768xf32>
    %2 = arith.addf %0, %1 : vector<64x768xf32>
    %cst = arith.constant dense<0.000000e+00> : vector<64xf32>
    %3 = vector.multi_reduction <add>, %2, %cst [1] : vector<64x768xf32> to vector<64xf32>
    %4 = vector.shape_cast %3 : vector<64xf32> to vector<64x1xf32>
    %cst_3 = arith.constant 0.00130208337 : f32
    %5 = vector.broadcast %cst_3 : f32 to vector<64x1xf32>
    %6 = arith.mulf %4, %5 : vector<64x1xf32>
    %7 = arith.mulf %2, %2 : vector<64x768xf32>
    %cst_4 = arith.constant dense<0.000000e+00> : vector<64xf32>
    %8 = vector.multi_reduction <add>, %7, %cst_4 [1] : vector<64x768xf32> to vector<64xf32>
    %9 = vector.shape_cast %8 : vector<64xf32> to vector<64x1xf32>
    %cst_5 = arith.constant 0.00130208337 : f32
    %10 = vector.broadcast %cst_5 : f32 to vector<64x1xf32>
    %11 = arith.mulf %9, %10 : vector<64x1xf32>
    %12 = arith.mulf %6, %6 : vector<64x1xf32>
    %13 = arith.subf %11, %12 : vector<64x1xf32>
    %cst_6 = arith.constant 0.000000e+00 : f32
    %14 = vector.broadcast %cst_6 : f32 to vector<64x1xf32>
    %15 = arith.maximumf %13, %14 : vector<64x1xf32>
    %cst_7 = arith.constant 9.99999974E-6 : f32
    %16 = vector.broadcast %cst_7 : f32 to vector<64x1xf32>
    %17 = arith.addf %15, %16 : vector<64x1xf32>
    %18 = math.rsqrt %17 : vector<64x1xf32>
    %19 = vector.broadcast %6 : vector<64x1xf32> to vector<64x768xf32>
    %20 = arith.subf %2, %19 : vector<64x768xf32>
    %21 = vector.broadcast %18 : vector<64x1xf32> to vector<64x768xf32>
    %22 = arith.mulf %20, %21 : vector<64x768xf32>
    %c0_8 = arith.constant 0 : index
    %c0_9 = arith.constant 0 : index
    %23 = vector.load %arg3[%c0_8, %c0_9] : memref<1x768xf32, #tpu.memory_space<vmem>>, vector<1x768xf32>
    %24 = vector.broadcast %23 : vector<1x768xf32> to vector<64x768xf32>
    %25 = arith.mulf %22, %24 : vector<64x768xf32>
    %c0_10 = arith.constant 0 : index
    %c0_11 = arith.constant 0 : index
    %26 = vector.load %arg4[%c0_10, %c0_11] : memref<1x768xf32, #tpu.memory_space<vmem>>, vector<1x768xf32>
    %27 = vector.broadcast %26 : vector<1x768xf32> to vector<64x768xf32>
    %28 = arith.addf %25, %27 : vector<64x768xf32>
    %c0_12 = arith.constant 0 : index
    %c0_13 = arith.constant 0 : index
    %29 = vector.load %arg5[%c0_12, %c0_13] : memref<64x768xf32, #tpu.memory_space<vmem>>, vector<64x768xf32>
    tpu.vector_store %arg5[%c0_12, %c0_13], %28 {strides = array<i32>} : memref<64x768xf32, #tpu.memory_space<vmem>>, vector<64x768xf32>,
    return
  }
  func.func @transform_0(%arg0: i32) -> (i32, i32) {
    %c0_i32 = arith.constant 0 : i32
    %c0_i32_0 = arith.constant 0 : i32
    return %arg0, %c0_i32 : i32, i32
  }
  func.func @transform_1(%arg0: i32) -> (i32, i32) {
    %c0_i32 = arith.constant 0 : i32
    %c0_i32_0 = arith.constant 0 : i32
    return %arg0, %c0_i32 : i32, i32
  }
  func.func @transform_2(%arg0: i32) -> (i32, i32) {
    %c0_i32 = arith.constant 0 : i32
    %c0_i32_0 = arith.constant 0 : i32
    %c0_i32_1 = arith.constant 0 : i32
    return %c0_i32, %c0_i32_0 : i32, i32
  }
  func.func @transform_3(%arg0: i32) -> (i32, i32) {
    %c0_i32 = arith.constant 0 : i32
    %c0_i32_0 = arith.constant 0 : i32
    %c0_i32_1 = arith.constant 0 : i32
    return %c0_i32, %c0_i32_0 : i32, i32
  }
  func.func @transform_4(%arg0: i32) -> (i32, i32) {
    %c0_i32 = arith.constant 0 : i32
    %c0_i32_0 = arith.constant 0 : i32
    return %arg0, %c0_i32 : i32, i32
  }
}

</mosaic_0001>

<llo_original>
// kernel: tpu_custom_call.1
$region0: #{tpu_custom_call.1}
  #allocation0 [shape = 'u32[]', space=smem, size = 0x4, offset = 0x4, fixed_abs, tag = 'smem constant byte address 0x4 - core index']
  #allocation1 [shape = 'u32[144,128]{1,0:T(1,128)}', space=vmem, size = 0x12000, scoped, tag = 'internal scratch']
  %s0 = inlined_call_operand.hbm [shape: f32[49,768], index: 0, kind: input, shape index: {}, may-alias: {0,4}]
  %s1 = inlined_call_operand.vmem [shape: f32[49,768], index: 1, kind: input, shape index: {}]
  %s2 = inlined_call_operand.vmem [shape: f32[1,768], index: 2, kind: input, shape index: {}]
  %s3 = inlined_call_operand.vmem [shape: f32[1,768], index: 3, kind: input, shape index: {}]
  %s4 = inlined_call_operand.hbm [shape: f32[49,768], index: 4, kind: output, shape index: {}, may-alias: {0,4}]
  %s5 = sld [smem:[#allocation0]]
  $region30: #{tpu_custom_call.1} parent=0
    _
  %s7 = ssub.s32 1, %s5
  %s8 = scalar_select 0, %s7, %s5
  $region1: #{tpu_custom_call.1} parent=0
    #allocation2 [shape = 'u8[196608]{0}', space=vmem, size = 0x30000, scoped, tag = 'input window, operand 0, single buffered']
    #allocation3 [shape = 's32[1]{0}', space=sflag, size = 0x4, scoped, tag = 'scoped memory for tpu_custom_call.1']
    #allocation4 [shape = 's32[1]{0}', space=sflag, size = 0x4, scoped, tag = 'scoped memory for tpu_custom_call.1']
    #allocation5 [shape = 'u8[196608]{0}', space=vmem, size = 0x30000, scoped, tag = 'output window, operand 0, single buffered']
    %9 = vsyncpa [#allocation3], 0
    %10 = vsyncpa [#allocation4], 0
    // Predicated region
    $region2: #{tpu_custom_call.1} parent=1 // pred_check
      _
    $region3: #{tpu_custom_call.1} parent=1 // pred_check_branch
      %12 = sbr.rel (0) target = $region5
    $region4: #{tpu_custom_call.1} parent=1 // pred_region
      %s14 = ssub.s32 6144, 5376
      %15 = vsyncadd [#allocation3], %s14
      %s16 = sshll.u32 [#allocation2], 4
      %s17 = int_to_ptr.vmem [resolvable:$true] %s16
      %22 = dma.hbm_to_vmem [thread:$0]  %s0, 5376, %s17, [#allocation3], 768, 768, 48
    $region5: #{tpu_custom_call.1} parent=1 // pred_fallthru
      _
    // Predicated region
    $region6: #{tpu_custom_call.1} parent=1 // pred_check
      _
    $region7: #{tpu_custom_call.1} parent=1 // pred_check_branch
      %24 = sbr.rel (0) target = $region9
    $region8: #{tpu_custom_call.1} parent=1 // pred_region
      _
    $region9: #{tpu_custom_call.1} parent=1 // pred_fallthru
      _
    // Predicated region
    $region10: #{tpu_custom_call.1} parent=1 // pred_check
      _
    $region11: #{tpu_custom_call.1} parent=1 // pred_check_branch
      %26 = sbr.rel (0) target = $region13
    $region12: #{tpu_custom_call.1} parent=1 // pred_region
      _
    $region13: #{tpu_custom_call.1} parent=1 // pred_fallthru
      _
    // Predicated region
    $region14: #{tpu_custom_call.1} parent=1 // pred_check
      _
    $region15: #{tpu_custom_call.1} parent=1 // pred_check_branch
      %28 = sbr.rel (0) target = $region17
    $region16: #{tpu_custom_call.1} parent=1 // pred_region
      _
    $region17: #{tpu_custom_call.1} parent=1 // pred_fallthru
      _
    // Predicated region
    $region18: #{tpu_custom_call.1} parent=1 // pred_check
      _
    $region19: #{tpu_custom_call.1} parent=1 // pred_check_branch
      %30 = sbr.rel (0) target = $region21
    $region20: #{tpu_custom_call.1} parent=1 // pred_region
      %31 = dma.done [#allocation3], 6144
    $region21: #{tpu_custom_call.1} parent=1 // pred_fallthru
      _
    %v32 = vld [vmem:[#allocation2] sm:$0xff]
    %v33 = vld [vmem:[#allocation2 + $0x8] sm:$0xff]
    %v34 = vld [vmem:[#allocation2 + $0x10] sm:$0xff]
    %v35 = vld [vmem:[#allocation2 + $0x18] sm:$0xff]
    %v36 = vld [vmem:[#allocation2 + $0x20] sm:$0xff]
    %v37 = vld [vmem:[#allocation2 + $0x28] sm:$0xff]
    %v38 = vld [vmem:[#allocation2 + $0x30] sm:$0xff]
    %v39 = vld [vmem:[#allocation2 + $0x38] sm:$0xff]
    %v40 = vld [vmem:[#allocation2 + $0x40] sm:$0xff]
    %v41 = vld [vmem:[#allocation2 + $0x48] sm:$0xff]
    %v42 = vld [vmem:[#allocation2 + $0x50] sm:$0xff]
    %v43 = vld [vmem:[#allocation2 + $0x58] sm:$0xff]
    %v44 = vld [vmem:[#allocation2 + $0x60] sm:$0xff]
    %v45 = vld [vmem:[#allocation2 + $0x68] sm:$0xff]
    %v46 = vld [vmem:[#allocation2 + $0x70] sm:$0xff]
    %v47 = vld [vmem:[#allocation2 + $0x78] sm:$0xff]
    %v48 = vld [vmem:[#allocation2 + $0x80] sm:$0xff]
    %v49 = vld [vmem:[#allocation2 + $0x88] sm:$0xff]
    %v50 = vld [vmem:[#allocation2 + $0x90] sm:$0xff]
    %v51 = vld [vmem:[#allocation2 + $0x98] sm:$0xff]
    %v52 = vld [vmem:[#allocation2 + $0xa0] sm:$0xff]
    %v53 = vld [vmem:[#allocation2 + $0xa8] sm:$0xff]
    %v54 = vld [vmem:[#allocation2 + $0xb0] sm:$0xff]
    %v55 = vld [vmem:[#allocation2 + $0xb8] sm:$0xff]
    %v56 = vld [vmem:[#allocation2 + $0xc0] sm:$0xff]
    %v57 = vld [vmem:[#allocation2 + $0xc8] sm:$0xff]
    %v58 = vld [vmem:[#allocation2 + $0xd0] sm:$0xff]
    %v59 = vld [vmem:[#allocation2 + $0xd8] sm:$0xff]
    %v60 = vld [vmem:[#allocation2 + $0xe0] sm:$0xff]
    %v61 = vld [vmem:[#allocation2 + $0xe8] sm:$0xff]
    %v62 = vld [vmem:[#allocation2 + $0xf0] sm:$0xff]
    %v63 = vld [vmem:[#allocation2 + $0xf8] sm:$0xff]
    %v64 = vld [vmem:[#allocation2 + $0x100] sm:$0xff]
    %v65 = vld [vmem:[#allocation2 + $0x108] sm:$0xff]
    %v66 = vld [vmem:[#allocation2 + $0x110] sm:$0xff]
    %v67 = vld [vmem:[#allocation2 + $0x118] sm:$0xff]
    %v68 = vld [vmem:[#allocation2 + $0x120] sm:$0xff]
    %v69 = vld [vmem:[#allocation2 + $0x128] sm:$0xff]
    %v70 = vld [vmem:[#allocation2 + $0x130] sm:$0xff]
    %v71 = vld [vmem:[#allocation2 + $0x138] sm:$0xff]
    %v72 = vld [vmem:[#allocation2 + $0x140] sm:$0xff]
    %v73 = vld [vmem:[#allocation2 + $0x148] sm:$0xff]
    %v74 = vld [vmem:[#allocation2 + $0x150] sm:$0xff]
    %v75 = vld [vmem:[#allocation2 + $0x158] sm:$0xff]
    %v76 = vld [vmem:[#allocation2 + $0x160] sm:$0xff]
    %v77 = vld [vmem:[#allocation2 + $0x168] sm:$0xff]
    %v78 = vld [vmem:[#allocation2 + $0x170] sm:$0xff]
    %v79 = vld [vmem:[#allocation2 + $0x178] sm:$0xff]
    %v80 = vld [vmem:[%s1] sm:$0xff]
    %v81 = vld [vmem:[%s1 + $0x8] sm:$0xff]
    %v82 = vld [vmem:[%s1 + $0x10] sm:$0xff]
    %v83 = vld [vmem:[%s1 + $0x18] sm:$0xff]
    %v84 = vld [vmem:[%s1 + $0x20] sm:$0xff]
    %v85 = vld [vmem:[%s1 + $0x28] sm:$0xff]
    %v86 = vld [vmem:[%s1 + $0x30] sm:$0xff]
    %v87 = vld [vmem:[%s1 + $0x38] sm:$0xff]
    %v88 = vld [vmem:[%s1 + $0x40] sm:$0xff]
    %v89 = vld [vmem:[%s1 + $0x48] sm:$0xff]
    %v90 = vld [vmem:[%s1 + $0x50] sm:$0xff]
    %v91 = vld [vmem:[%s1 + $0x58] sm:$0xff]
    %v92 = vld [vmem:[%s1 + $0x60] sm:$0xff]
    %v93 = vld [vmem:[%s1 + $0x68] sm:$0xff]
    %v94 = vld [vmem:[%s1 + $0x70] sm:$0xff]
    %v95 = vld [vmem:[%s1 + $0x78] sm:$0xff]
    %v96 = vld [vmem:[%s1 + $0x80] sm:$0xff]
    %v97 = vld [vmem:[%s1 + $0x88] sm:$0xff]
    %v98 = vld [vmem:[%s1 + $0x90] sm:$0xff]
    %v99 = vld [vmem:[%s1 + $0x98] sm:$0xff]
    %v100 = vld [vmem:[%s1 + $0xa0] sm:$0xff]
    %v101 = vld [vmem:[%s1 + $0xa8] sm:$0xff]
    %v102 = vld [vmem:[%s1 + $0xb0] sm:$0xff]
    %v103 = vld [vmem:[%s1 + $0xb8] sm:$0xff]
    %v104 = vld [vmem:[%s1 + $0xc0] sm:$0xff]
    %v105 = vld [vmem:[%s1 + $0xc8] sm:$0xff]
    %v106 = vld [vmem:[%s1 + $0xd0] sm:$0xff]
    %v107 = vld [vmem:[%s1 + $0xd8] sm:$0xff]
    %v108 = vld [vmem:[%s1 + $0xe0] sm:$0xff]
    %v109 = vld [vmem:[%s1 + $0xe8] sm:$0xff]
    %v110 = vld [vmem:[%s1 + $0xf0] sm:$0xff]
    %v111 = vld [vmem:[%s1 + $0xf8] sm:$0xff]
    %v112 = vld [vmem:[%s1 + $0x100] sm:$0xff]
    %v113 = vld [vmem:[%s1 + $0x108] sm:$0xff]
    %v114 = vld [vmem:[%s1 + $0x110] sm:$0xff]
    %v115 = vld [vmem:[%s1 + $0x118] sm:$0xff]
    %v116 = vld [vmem:[%s1 + $0x120] sm:$0xff]
    %v117 = vld [vmem:[%s1 + $0x128] sm:$0xff]
    %v118 = vld [vmem:[%s1 + $0x130] sm:$0xff]
    %v119 = vld [vmem:[%s1 + $0x138] sm:$0xff]
    %v120 = vld [vmem:[%s1 + $0x140] sm:$0xff]
    %v121 = vld [vmem:[%s1 + $0x148] sm:$0xff]
    %v122 = vld [vmem:[%s1 + $0x150] sm:$0xff]
    %v123 = vld [vmem:[%s1 + $0x158] sm:$0xff]
    %v124 = vld [vmem:[%s1 + $0x160] sm:$0xff]
    %v125 = vld [vmem:[%s1 + $0x168] sm:$0xff]
    %v126 = vld [vmem:[%s1 + $0x170] sm:$0xff]
    %v127 = vld [vmem:[%s1 + $0x178] sm:$0xff]
    %v128 = vadd.f32 %v32, %v80
    %v129 = vadd.f32 %v33, %v81
    %v130 = vadd.f32 %v34, %v82
    %v131 = vadd.f32 %v35, %v83
    %v132 = vadd.f32 %v36, %v84
    %v133 = vadd.f32 %v37, %v85
    %v134 = vadd.f32 %v38, %v86
    %v135 = vadd.f32 %v39, %v87
    %v136 = vadd.f32 %v40, %v88
    %v137 = vadd.f32 %v41, %v89
    %v138 = vadd.f32 %v42, %v90
    %v139 = vadd.f32 %v43, %v91
    %v140 = vadd.f32 %v44, %v92
    %v141 = vadd.f32 %v45, %v93
    %v142 = vadd.f32 %v46, %v94
    %v143 = vadd.f32 %v47, %v95
    %v144 = vadd.f32 %v48, %v96
    %v145 = vadd.f32 %v49, %v97
    %v146 = vadd.f32 %v50, %v98
    %v147 = vadd.f32 %v51, %v99
    %v148 = vadd.f32 %v52, %v100
    %v149 = vadd.f32 %v53, %v101
    %v150 = vadd.f32 %v54, %v102
    %v151 = vadd.f32 %v55, %v103
    %v152 = vadd.f32 %v56, %v104
    %v153 = vadd.f32 %v57, %v105
    %v154 = vadd.f32 %v58, %v106
    %v155 = vadd.f32 %v59, %v107
    %v156 = vadd.f32 %v60, %v108
    %v157 = vadd.f32 %v61, %v109
    %v158 = vadd.f32 %v62, %v110
    %v159 = vadd.f32 %v63, %v111
    %v160 = vadd.f32 %v64, %v112
    %v161 = vadd.f32 %v65, %v113
    %v162 = vadd.f32 %v66, %v114
    %v163 = vadd.f32 %v67, %v115
    %v164 = vadd.f32 %v68, %v116
    %v165 = vadd.f32 %v69, %v117
    %v166 = vadd.f32 %v70, %v118
    %v167 = vadd.f32 %v71, %v119
    %v168 = vadd.f32 %v72, %v120
    %v169 = vadd.f32 %v73, %v121
    %v170 = vadd.f32 %v74, %v122
    %v171 = vadd.f32 %v75, %v123
    %v172 = vadd.f32 %v76, %v124
    %v173 = vadd.f32 %v77, %v125
    %v174 = vadd.f32 %v78, %v126
    %v175 = vadd.f32 %v79, %v127
    %v176 = vadd.f32 %v128, %v129
    %v177 = vadd.f32 %v176, %v130
    %v178 = vadd.f32 %v177, %v131
    %v179 = vadd.f32 %v178, %v132
    %v180 = vadd.f32 %v179, %v133
    %181 = vadd.xlane.f32.xlu0 %v180
    %v182 = vpop.xlane.xlu0 %181
    %v183 = vadd.f32 %v134, %v135
    %v184 = vadd.f32 %v183, %v136
    %v185 = vadd.f32 %v184, %v137
    %v186 = vadd.f32 %v185, %v138
    %v187 = vadd.f32 %v186, %v139
    %188 = vadd.xlane.f32.xlu0 %v187
    %v189 = vpop.xlane.xlu0 %188
    %v190 = vadd.f32 %v140, %v141
    %v191 = vadd.f32 %v190, %v142
    %v192 = vadd.f32 %v191, %v143
    %v193 = vadd.f32 %v192, %v144
    %v194 = vadd.f32 %v193, %v145
    %195 = vadd.xlane.f32.xlu0 %v194
    %v196 = vpop.xlane.xlu0 %195
    %v197 = vadd.f32 %v146, %v147
    %v198 = vadd.f32 %v197, %v148
    %v199 = vadd.f32 %v198, %v149
    %v200 = vadd.f32 %v199, %v150
    %v201 = vadd.f32 %v200, %v151
    %202 = vadd.xlane.f32.xlu0 %v201
    %v203 = vpop.xlane.xlu0 %202
    %v204 = vadd.f32 %v152, %v153
    %v205 = vadd.f32 %v204, %v154
    %v206 = vadd.f32 %v205, %v155
    %v207 = vadd.f32 %v206, %v156
    %v208 = vadd.f32 %v207, %v157
    %209 = vadd.xlane.f32.xlu0 %v208
    %v210 = vpop.xlane.xlu0 %209
    %v211 = vadd.f32 %v158, %v159
    %v212 = vadd.f32 %v211, %v160
    %v213 = vadd.f32 %v212, %v161
    %v214 = vadd.f32 %v213, %v162
    %v215 = vadd.f32 %v214, %v163
    %216 = vadd.xlane.f32.xlu0 %v215
    %v217 = vpop.xlane.xlu0 %216
    %v218 = vadd.f32 %v164, %v165
    %v219 = vadd.f32 %v218, %v166
    %v220 = vadd.f32 %v219, %v167
    %v221 = vadd.f32 %v220, %v168
    %v222 = vadd.f32 %v221, %v169
    %223 = vadd.xlane.f32.xlu0 %v222
    %v224 = vpop.xlane.xlu0 %223
    %v225 = vadd.f32 %v170, %v171
    %v226 = vadd.f32 %v225, %v172
    %v227 = vadd.f32 %v226, %v173
    %v228 = vadd.f32 %v227, %v174
    %v229 = vadd.f32 %v228, %v175
    %230 = vadd.xlane.f32.xlu0 %v229
    %v231 = vpop.xlane.xlu0 %230
    %v232 = vmul.f32 %v182, 0.0013020834
    %v233 = vmul.f32 %v189, 0.0013020834
    %v234 = vmul.f32 %v196, 0.0013020834
    %v235 = vmul.f32 %v203, 0.0013020834
    %v236 = vmul.f32 %v210, 0.0013020834
    %v237 = vmul.f32 %v217, 0.0013020834
    %v238 = vmul.f32 %v224, 0.0013020834
    %v239 = vmul.f32 %v231, 0.0013020834
    %v240 = vmul.f32 %v128, %v128
    %v241 = vmul.f32 %v129, %v129
    %v242 = vmul.f32 %v130, %v130
    %v243 = vmul.f32 %v131, %v131
    %v244 = vmul.f32 %v132, %v132
    %v245 = vmul.f32 %v133, %v133
    %v246 = vmul.f32 %v134, %v134
    %v247 = vmul.f32 %v135, %v135
    %v248 = vmul.f32 %v136, %v136
    %v249 = vmul.f32 %v137, %v137
    %v250 = vmul.f32 %v138, %v138
    %v251 = vmul.f32 %v139, %v139
    %v252 = vmul.f32 %v140, %v140
    %v253 = vmul.f32 %v141, %v141
    %v254 = vmul.f32 %v142, %v142
    %v255 = vmul.f32 %v143, %v143
    %v256 = vmul.f32 %v144, %v144
    %v257 = vmul.f32 %v145, %v145
    %v258 = vmul.f32 %v146, %v146
    %v259 = vmul.f32 %v147, %v147
    %v260 = vmul.f32 %v148, %v148
    %v261 = vmul.f32 %v149, %v149
    %v262 = vmul.f32 %v150, %v150
    %v263 = vmul.f32 %v151, %v151
    %v264 = vmul.f32 %v152, %v152
    %v265 = vmul.f32 %v153, %v153
    %v266 = vmul.f32 %v154, %v154
    %v267 = vmul.f32 %v155, %v155
    %v268 = vmul.f32 %v156, %v156
    %v269 = vmul.f32 %v157, %v157
    %v270 = vmul.f32 %v158, %v158
    %v271 = vmul.f32 %v159, %v159
    %v272 = vmul.f32 %v160, %v160
    %v273 = vmul.f32 %v161, %v161
    %v274 = vmul.f32 %v162, %v162
    %v275 = vmul.f32 %v163, %v163
    %v276 = vmul.f32 %v164, %v164
    %v277 = vmul.f32 %v165, %v165
    %v278 = vmul.f32 %v166, %v166
    %v279 = vmul.f32 %v167, %v167
    %v280 = vmul.f32 %v168, %v168
    %v281 = vmul.f32 %v169, %v169
    %v282 = vmul.f32 %v170, %v170
    %v283 = vmul.f32 %v171, %v171
    %v284 = vmul.f32 %v172, %v172
    %v285 = vmul.f32 %v173, %v173
    %v286 = vmul.f32 %v174, %v174
    %v287 = vmul.f32 %v175, %v175
    %v288 = vadd.f32 %v240, %v241
    %v289 = vadd.f32 %v288, %v242
    %v290 = vadd.f32 %v289, %v243
    %v291 = vadd.f32 %v290, %v244
    %v292 = vadd.f32 %v291, %v245
    %293 = vadd.xlane.f32.xlu0 %v292
    %v294 = vpop.xlane.xlu0 %293
    %v295 = vadd.f32 %v246, %v247
    %v296 = vadd.f32 %v295, %v248
    %v297 = vadd.f32 %v296, %v249
    %v298 = vadd.f32 %v297, %v250
    %v299 = vadd.f32 %v298, %v251
    %300 = vadd.xlane.f32.xlu0 %v299
    %v301 = vpop.xlane.xlu0 %300
    %v302 = vadd.f32 %v252, %v253
    %v303 = vadd.f32 %v302, %v254
    %v304 = vadd.f32 %v303, %v255
    %v305 = vadd.f32 %v304, %v256
    %v306 = vadd.f32 %v305, %v257
    %307 = vadd.xlane.f32.xlu0 %v306
    %v308 = vpop.xlane.xlu0 %307
    %v309 = vadd.f32 %v258, %v259
    %v310 = vadd.f32 %v309, %v260
    %v311 = vadd.f32 %v310, %v261
    %v312 = vadd.f32 %v311, %v262
    %v313 = vadd.f32 %v312, %v263
    %314 = vadd.xlane.f32.xlu0 %v313
    %v315 = vpop.xlane.xlu0 %314
    %v316 = vadd.f32 %v264, %v265
    %v317 = vadd.f32 %v316, %v266
    %v318 = vadd.f32 %v317, %v267
    %v319 = vadd.f32 %v318, %v268
    %v320 = vadd.f32 %v319, %v269
    %321 = vadd.xlane.f32.xlu0 %v320
    %v322 = vpop.xlane.xlu0 %321
    %v323 = vadd.f32 %v270, %v271
    %v324 = vadd.f32 %v323, %v272
    %v325 = vadd.f32 %v324, %v273
    %v326 = vadd.f32 %v325, %v274
    %v327 = vadd.f32 %v326, %v275
    %328 = vadd.xlane.f32.xlu0 %v327
    %v329 = vpop.xlane.xlu0 %328
    %v330 = vadd.f32 %v276, %v277
    %v331 = vadd.f32 %v330, %v278
    %v332 = vadd.f32 %v331, %v279
    %v333 = vadd.f32 %v332, %v280
    %v334 = vadd.f32 %v333, %v281
    %335 = vadd.xlane.f32.xlu0 %v334
    %v336 = vpop.xlane.xlu0 %335
    %v337 = vadd.f32 %v282, %v283
    %v338 = vadd.f32 %v337, %v284
    %v339 = vadd.f32 %v338, %v285
    %v340 = vadd.f32 %v339, %v286
    %v341 = vadd.f32 %v340, %v287
    %342 = vadd.xlane.f32.xlu0 %v341
    %v343 = vpop.xlane.xlu0 %342
    %v344 = vmul.f32 %v294, 0.0013020834
    %v345 = vmul.f32 %v301, 0.0013020834
    %v346 = vmul.f32 %v308, 0.0013020834
    %v347 = vmul.f32 %v315, 0.0013020834
    %v348 = vmul.f32 %v322, 0.0013020834
    %v349 = vmul.f32 %v329, 0.0013020834
    %v350 = vmul.f32 %v336, 0.0013020834
    %v351 = vmul.f32 %v343, 0.0013020834
    %v352 = vmul.f32 %v232, %v232
    %v353 = vmul.f32 %v233, %v233
    %v354 = vmul.f32 %v234, %v234
    %v355 = vmul.f32 %v235, %v235
    %v356 = vmul.f32 %v236, %v236
    %v357 = vmul.f32 %v237, %v237
    %v358 = vmul.f32 %v238, %v238
    %v359 = vmul.f32 %v239, %v239
    %v360 = vsub.f32 %v344, %v352
    %v361 = vsub.f32 %v345, %v353
    %v362 = vsub.f32 %v346, %v354
    %v363 = vsub.f32 %v347, %v355
    %v364 = vsub.f32 %v348, %v356
    %v365 = vsub.f32 %v349, %v357
    %v366 = vsub.f32 %v350, %v358
    %v367 = vsub.f32 %v351, %v359
    %v368 = vmax.f32 %v360, 0.0
    %v369 = vmax.f32 %v361, 0.0
    %v370 = vmax.f32 %v362, 0.0
    %v371 = vmax.f32 %v363, 0.0
    %v372 = vmax.f32 %v364, 0.0
    %v373 = vmax.f32 %v365, 0.0
    %v374 = vmax.f32 %v366, 0.0
    %v375 = vmax.f32 %v367, 0.0
    %v376 = vadd.f32 %v368, 1e-05
    %v377 = vadd.f32 %v369, 1e-05
    %v378 = vadd.f32 %v370, 1e-05
    %v379 = vadd.f32 %v371, 1e-05
    %v380 = vadd.f32 %v372, 1e-05
    %v381 = vadd.f32 %v373, 1e-05
    %v382 = vadd.f32 %v374, 1e-05
    %v383 = vadd.f32 %v375, 1e-05
    %v384 = vrsqrt.pop %v376
    %v385 = vrsqrt.pop %v377
    %v386 = vrsqrt.pop %v378
    %v387 = vrsqrt.pop %v379
    %v388 = vrsqrt.pop %v380
    %v389 = vrsqrt.pop %v381
    %v390 = vrsqrt.pop %v382
    %v391 = vrsqrt.pop %v383
    %v392 = vsub.f32 %v128, %v232
    %v393 = vsub.f32 %v129, %v232
    %v394 = vsub.f32 %v130, %v232
    %v395 = vsub.f32 %v131, %v232
    %v396 = vsub.f32 %v132, %v232
    %v397 = vsub.f32 %v133, %v232
    %v398 = vsub.f32 %v134, %v233
    %v399 = vsub.f32 %v135, %v233
    %v400 = vsub.f32 %v136, %v233
    %v401 = vsub.f32 %v137, %v233
    %v402 = vsub.f32 %v138, %v233
    %v403 = vsub.f32 %v139, %v233
    %v404 = vsub.f32 %v140, %v234
    %v405 = vsub.f32 %v141, %v234
    %v406 = vsub.f32 %v142, %v234
    %v407 = vsub.f32 %v143, %v234
    %v408 = vsub.f32 %v144, %v234
    %v409 = vsub.f32 %v145, %v234
    %v410 = vsub.f32 %v146, %v235
    %v411 = vsub.f32 %v147, %v235
    %v412 = vsub.f32 %v148, %v235
    %v413 = vsub.f32 %v149, %v235
    %v414 = vsub.f32 %v150, %v235
    %v415 = vsub.f32 %v151, %v235
    %v416 = vsub.f32 %v152, %v236
    %v417 = vsub.f32 %v153, %v236
    %v418 = vsub.f32 %v154, %v236
    %v419 = vsub.f32 %v155, %v236
    %v420 = vsub.f32 %v156, %v236
    %v421 = vsub.f32 %v157, %v236
    %v422 = vsub.f32 %v158, %v237
    %v423 = vsub.f32 %v159, %v237
    %v424 = vsub.f32 %v160, %v237
    %v425 = vsub.f32 %v161, %v237
    %v426 = vsub.f32 %v162, %v237
    %v427 = vsub.f32 %v163, %v237
    %v428 = vsub.f32 %v164, %v238
    %v429 = vsub.f32 %v165, %v238
    %v430 = vsub.f32 %v166, %v238
    %v431 = vsub.f32 %v167, %v238
    %v432 = vsub.f32 %v168, %v238
    %v433 = vsub.f32 %v169, %v238
    %v434 = vsub.f32 %v170, %v239
    %v435 = vsub.f32 %v171, %v239
    %v436 = vsub.f32 %v172, %v239
    %v437 = vsub.f32 %v173, %v239
    %v438 = vsub.f32 %v174, %v239
    %v439 = vsub.f32 %v175, %v239
    %v440 = vmul.f32 %v392, %v384
    %v441 = vmul.f32 %v393, %v384
    %v442 = vmul.f32 %v394, %v384
    %v443 = vmul.f32 %v395, %v384
    %v444 = vmul.f32 %v396, %v384
    %v445 = vmul.f32 %v397, %v384
    %v446 = vmul.f32 %v398, %v385
    %v447 = vmul.f32 %v399, %v385
    %v448 = vmul.f32 %v400, %v385
    %v449 = vmul.f32 %v401, %v385
    %v450 = vmul.f32 %v402, %v385
    %v451 = vmul.f32 %v403, %v385
    %v452 = vmul.f32 %v404, %v386
    %v453 = vmul.f32 %v405, %v386
    %v454 = vmul.f32 %v406, %v386
    %v455 = vmul.f32 %v407, %v386
    %v456 = vmul.f32 %v408, %v386
    %v457 = vmul.f32 %v409, %v386
    %v458 = vmul.f32 %v410, %v387
    %v459 = vmul.f32 %v411, %v387
    %v460 = vmul.f32 %v412, %v387
    %v461 = vmul.f32 %v413, %v387
    %v462 = vmul.f32 %v414, %v387
    %v463 = vmul.f32 %v415, %v387
    %v464 = vmul.f32 %v416, %v388
    %v465 = vmul.f32 %v417, %v388
    %v466 = vmul.f32 %v418, %v388
    %v467 = vmul.f32 %v419, %v388
    %v468 = vmul.f32 %v420, %v388
    %v469 = vmul.f32 %v421, %v388
    %v470 = vmul.f32 %v422, %v389
    %v471 = vmul.f32 %v423, %v389
    %v472 = vmul.f32 %v424, %v389
    %v473 = vmul.f32 %v425, %v389
    %v474 = vmul.f32 %v426, %v389
    %v475 = vmul.f32 %v427, %v389
    %v476 = vmul.f32 %v428, %v390
    %v477 = vmul.f32 %v429, %v390
    %v478 = vmul.f32 %v430, %v390
    %v479 = vmul.f32 %v431, %v390
    %v480 = vmul.f32 %v432, %v390
    %v481 = vmul.f32 %v433, %v390
    %v482 = vmul.f32 %v434, %v391
    %v483 = vmul.f32 %v435, %v391
    %v484 = vmul.f32 %v436, %v391
    %v485 = vmul.f32 %v437, %v391
    %v486 = vmul.f32 %v438, %v391
    %v487 = vmul.f32 %v439, %v391
    %v488 = vld [vmem:[%s2] sm:$0x3f]
    %v490 = vlaneseq
    %v491 = vshrl.u32 %v490, 7
    %v492 = vsub.s32 0, %v491
    %v493 = vrot.slane %v488, %v492
    %v494 = vlaneseq
    %v495 = vshrl.u32 %v494, 7
    %v496 = vsub.s32 1, %v495
    %v497 = vrot.slane %v488, %v496
    %v498 = vlaneseq
    %v499 = vshrl.u32 %v498, 7
    %v500 = vsub.s32 2, %v499
    %v501 = vrot.slane %v488, %v500
    %v502 = vlaneseq
    %v503 = vshrl.u32 %v502, 7
    %v504 = vsub.s32 3, %v503
    %v505 = vrot.slane %v488, %v504
    %v506 = vlaneseq
    %v507 = vshrl.u32 %v506, 7
    %v508 = vsub.s32 4, %v507
    %v509 = vrot.slane %v488, %v508
    %v510 = vlaneseq
    %v511 = vshrl.u32 %v510, 7
    %v512 = vsub.s32 5, %v511
    %v513 = vrot.slane %v488, %v512
    %v520 = vmul.f32 %v440, %v493
    %v521 = vmul.f32 %v441, %v497
    %v522 = vmul.f32 %v442, %v501
    %v523 = vmul.f32 %v443, %v505
    %v524 = vmul.f32 %v444, %v509
    %v525 = vmul.f32 %v445, %v513
    %v526 = vmul.f32 %v446, %v493
    %v527 = vmul.f32 %v447, %v497
    %v528 = vmul.f32 %v448, %v501
    %v529 = vmul.f32 %v449, %v505
    %v530 = vmul.f32 %v450, %v509
    %v531 = vmul.f32 %v451, %v513
    %v532 = vmul.f32 %v452, %v493
    %v533 = vmul.f32 %v453, %v497
    %v534 = vmul.f32 %v454, %v501
    %v535 = vmul.f32 %v455, %v505
    %v536 = vmul.f32 %v456, %v509
    %v537 = vmul.f32 %v457, %v513
    %v538 = vmul.f32 %v458, %v493
    %v539 = vmul.f32 %v459, %v497
    %v540 = vmul.f32 %v460, %v501
    %v541 = vmul.f32 %v461, %v505
    %v542 = vmul.f32 %v462, %v509
    %v543 = vmul.f32 %v463, %v513
    %v544 = vmul.f32 %v464, %v493
    %v545 = vmul.f32 %v465, %v497
    %v546 = vmul.f32 %v466, %v501
    %v547 = vmul.f32 %v467, %v505
    %v548 = vmul.f32 %v468, %v509
    %v549 = vmul.f32 %v469, %v513
    %v550 = vmul.f32 %v470, %v493
    %v551 = vmul.f32 %v471, %v497
    %v552 = vmul.f32 %v472, %v501
    %v553 = vmul.f32 %v473, %v505
    %v554 = vmul.f32 %v474, %v509
    %v555 = vmul.f32 %v475, %v513
    %v556 = vmul.f32 %v476, %v493
    %v557 = vmul.f32 %v477, %v497
    %v558 = vmul.f32 %v478, %v501
    %v559 = vmul.f32 %v479, %v505
    %v560 = vmul.f32 %v480, %v509
    %v561 = vmul.f32 %v481, %v513
    %v562 = vmul.f32 %v482, %v493
    %v563 = vmul.f32 %v483, %v497
    %v564 = vmul.f32 %v484, %v501
    %v565 = vmul.f32 %v485, %v505
    %v566 = vmul.f32 %v486, %v509
    %v567 = vmul.f32 %v487, %v513
    %v568 = vld [vmem:[%s3] sm:$0x3f]
    %v570 = vlaneseq
    %v571 = vshrl.u32 %v570, 7
    %v572 = vsub.s32 0, %v571
    %v573 = vrot.slane %v568, %v572
    %v574 = vlaneseq
    %v575 = vshrl.u32 %v574, 7
    %v576 = vsub.s32 1, %v575
    %v577 = vrot.slane %v568, %v576
    %v578 = vlaneseq
    %v579 = vshrl.u32 %v578, 7
    %v580 = vsub.s32 2, %v579
    %v581 = vrot.slane %v568, %v580
    %v582 = vlaneseq
    %v583 = vshrl.u32 %v582, 7
    %v584 = vsub.s32 3, %v583
    %v585 = vrot.slane %v568, %v584
    %v586 = vlaneseq
    %v587 = vshrl.u32 %v586, 7
    %v588 = vsub.s32 4, %v587
    %v589 = vrot.slane %v568, %v588
    %v590 = vlaneseq
    %v591 = vshrl.u32 %v590, 7
    %v592 = vsub.s32 5, %v591
    %v593 = vrot.slane %v568, %v592
    %v600 = vadd.f32 %v520, %v573
    %v601 = vadd.f32 %v521, %v577
    %v602 = vadd.f32 %v522, %v581
    %v603 = vadd.f32 %v523, %v585
    %v604 = vadd.f32 %v524, %v589
    %v605 = vadd.f32 %v525, %v593
    %v606 = vadd.f32 %v526, %v573
    %v607 = vadd.f32 %v527, %v577
    %v608 = vadd.f32 %v528, %v581
    %v609 = vadd.f32 %v529, %v585
    %v610 = vadd.f32 %v530, %v589
    %v611 = vadd.f32 %v531, %v593
    %v612 = vadd.f32 %v532, %v573
    %v613 = vadd.f32 %v533, %v577
    %v614 = vadd.f32 %v534, %v581
    %v615 = vadd.f32 %v535, %v585
    %v616 = vadd.f32 %v536, %v589
    %v617 = vadd.f32 %v537, %v593
    %v618 = vadd.f32 %v538, %v573
    %v619 = vadd.f32 %v539, %v577
    %v620 = vadd.f32 %v540, %v581
    %v621 = vadd.f32 %v541, %v585
    %v622 = vadd.f32 %v542, %v589
    %v623 = vadd.f32 %v543, %v593
    %v624 = vadd.f32 %v544, %v573
    %v625 = vadd.f32 %v545, %v577
    %v626 = vadd.f32 %v546, %v581
    %v627 = vadd.f32 %v547, %v585
    %v628 = vadd.f32 %v548, %v589
    %v629 = vadd.f32 %v549, %v593
    %v630 = vadd.f32 %v550, %v573
    %v631 = vadd.f32 %v551, %v577
    %v632 = vadd.f32 %v552, %v581
    %v633 = vadd.f32 %v553, %v585
    %v634 = vadd.f32 %v554, %v589
    %v635 = vadd.f32 %v555, %v593
    %v636 = vadd.f32 %v556, %v573
    %v637 = vadd.f32 %v557, %v577
    %v638 = vadd.f32 %v558, %v581
    %v639 = vadd.f32 %v559, %v585
    %v640 = vadd.f32 %v560, %v589
    %v641 = vadd.f32 %v561, %v593
    %v642 = vadd.f32 %v562, %v573
    %v643 = vadd.f32 %v563, %v577
    %v644 = vadd.f32 %v564, %v581
    %v645 = vadd.f32 %v565, %v585
    %v646 = vadd.f32 %v566, %v589
    %v647 = vadd.f32 %v567, %v593
    %648 = vst [vmem:[#allocation5] sm:$0xff] %v600
    %649 = vst [vmem:[#allocation5 + $0x8] sm:$0xff] %v601
    %650 = vst [vmem:[#allocation5 + $0x10] sm:$0xff] %v602
    %651 = vst [vmem:[#allocation5 + $0x18] sm:$0xff] %v603
    %652 = vst [vmem:[#allocation5 + $0x20] sm:$0xff] %v604
    %653 = vst [vmem:[#allocation5 + $0x28] sm:$0xff] %v605
    %654 = vst [vmem:[#allocation5 + $0x30] sm:$0xff] %v606
    %655 = vst [vmem:[#allocation5 + $0x38] sm:$0xff] %v607
    %656 = vst [vmem:[#allocation5 + $0x40] sm:$0xff] %v608
    %657 = vst [vmem:[#allocation5 + $0x48] sm:$0xff] %v609
    %658 = vst [vmem:[#allocation5 + $0x50] sm:$0xff] %v610
    %659 = vst [vmem:[#allocation5 + $0x58] sm:$0xff] %v611
    %660 = vst [vmem:[#allocation5 + $0x60] sm:$0xff] %v612
    %661 = vst [vmem:[#allocation5 + $0x68] sm:$0xff] %v613
    %662 = vst [vmem:[#allocation5 + $0x70] sm:$0xff] %v614
    %663 = vst [vmem:[#allocation5 + $0x78] sm:$0xff] %v615
    %664 = vst [vmem:[#allocation5 + $0x80] sm:$0xff] %v616
    %665 = vst [vmem:[#allocation5 + $0x88] sm:$0xff] %v617
    %666 = vst [vmem:[#allocation5 + $0x90] sm:$0xff] %v618
    %667 = vst [vmem:[#allocation5 + $0x98] sm:$0xff] %v619
    %668 = vst [vmem:[#allocation5 + $0xa0] sm:$0xff] %v620
    %669 = vst [vmem:[#allocation5 + $0xa8] sm:$0xff] %v621
    %670 = vst [vmem:[#allocation5 + $0xb0] sm:$0xff] %v622
    %671 = vst [vmem:[#allocation5 + $0xb8] sm:$0xff] %v623
    %672 = vst [vmem:[#allocation5 + $0xc0] sm:$0xff] %v624
    %673 = vst [vmem:[#allocation5 + $0xc8] sm:$0xff] %v625
    %674 = vst [vmem:[#allocation5 + $0xd0] sm:$0xff] %v626
    %675 = vst [vmem:[#allocation5 + $0xd8] sm:$0xff] %v627
    %676 = vst [vmem:[#allocation5 + $0xe0] sm:$0xff] %v628
    %677 = vst [vmem:[#allocation5 + $0xe8] sm:$0xff] %v629
    %678 = vst [vmem:[#allocation5 + $0xf0] sm:$0xff] %v630
    %679 = vst [vmem:[#allocation5 + $0xf8] sm:$0xff] %v631
    %680 = vst [vmem:[#allocation5 + $0x100] sm:$0xff] %v632
    %681 = vst [vmem:[#allocation5 + $0x108] sm:$0xff] %v633
    %682 = vst [vmem:[#allocation5 + $0x110] sm:$0xff] %v634
    %683 = vst [vmem:[#allocation5 + $0x118] sm:$0xff] %v635
    %684 = vst [vmem:[#allocation5 + $0x120] sm:$0xff] %v636
    %685 = vst [vmem:[#allocation5 + $0x128] sm:$0xff] %v637
    %686 = vst [vmem:[#allocation5 + $0x130] sm:$0xff] %v638
    %687 = vst [vmem:[#allocation5 + $0x138] sm:$0xff] %v639
    %688 = vst [vmem:[#allocation5 + $0x140] sm:$0xff] %v640
    %689 = vst [vmem:[#allocation5 + $0x148] sm:$0xff] %v641
    %690 = vst [vmem:[#allocation5 + $0x150] sm:$0xff] %v642
    %691 = vst [vmem:[#allocation5 + $0x158] sm:$0xff] %v643
    %692 = vst [vmem:[#allocation5 + $0x160] sm:$0xff] %v644
    %693 = vst [vmem:[#allocation5 + $0x168] sm:$0xff] %v645
    %694 = vst [vmem:[#allocation5 + $0x170] sm:$0xff] %v646
    %695 = vst [vmem:[#allocation5 + $0x178] sm:$0xff] %v647
    // Predicated region
    $region22: #{tpu_custom_call.1} parent=1 // pred_check
      _
    $region23: #{tpu_custom_call.1} parent=1 // pred_check_branch
      %697 = sbr.rel (0) target = $region25
    $region24: #{tpu_custom_call.1} parent=1 // pred_region
      %s699 = ssub.s32 6144, 5376
      %700 = vsyncadd [#allocation4], %s699
      %s701 = sshll.u32 [#allocation5], 4
      %s702 = int_to_ptr.vmem [resolvable:$true] %s701
      %707 = dma.vmem_to_hbm [thread:$0]  %s702, 5376, %s4, [#allocation4], 768, 768, 48
    $region25: #{tpu_custom_call.1} parent=1 // pred_fallthru
      _
    // Predicated region
    $region26: #{tpu_custom_call.1} parent=1 // pred_check
      _
    $region27: #{tpu_custom_call.1} parent=1 // pred_check_branch
      %709 = sbr.rel (0) target = $region29
    $region28: #{tpu_custom_call.1} parent=1 // pred_region
      %710 = dma.done [#allocation4], 6144
    $region29: #{tpu_custom_call.1} parent=1 // pred_fallthru
      _
    %711 = vsyncpa [#allocation3], 1
    %712 = vsyncpa [#allocation4], 1

</llo_original>
